<compile_context>
chip_gen: v7x
topology: tpu7x:2x2x1
jax: 0.10.0
libtpu: 0.0.40
codegen_flags: <defaults>
</compile_context>

<pallas_src>
import functools

import jax
import jax.numpy as jnp
from jax.experimental import pallas as pl
from jax.experimental.pallas import tpu as pltpu


def _round_up(x: int, m: int) -> int:
    return (x + m - 1) // m * m


def generator_kernel(xc_ref, xn_ref, w1c_ref, w1n_ref, b1_ref, w2_ref, b2_ref, o_ref):
    # xc_ref : (TM, cond_dim)        VMEM   (batch tile)
    # xn_ref : (TM, noise_dim)       VMEM   (batch tile)
    # w1c_ref: (cond_dim, H_pad)     VMEM   (resident)
    # w1n_ref: (noise_dim, H_pad)    VMEM   (resident)
    # b1_ref : (1, H_pad)            VMEM   (resident)
    # w2_ref : (H_pad, N_pad)        VMEM   (resident)
    # b2_ref : (1, N_pad)            VMEM   (resident)
    # o_ref  : (TM, N_pad)           VMEM   (lane-dense output tile)
    #
    # Fused concat: x @ W1 == x_cond @ W1[:cond] + x_noise @ W1[cond:]  (accumulated in f32)
    h = (
        jnp.dot(xc_ref[...], w1c_ref[...], preferred_element_type=jnp.float32)
        + jnp.dot(xn_ref[...], w1n_ref[...], preferred_element_type=jnp.float32)
        + b1_ref[...]
    )
    h = jnp.tanh(h)  # EUP, f32 (keep f32 intermediates — v5e has no bf16 EUP/VPU)
    out = (
        jnp.dot(h.astype(w2_ref.dtype), w2_ref[...], preferred_element_type=jnp.float32)
        + b2_ref[...]
    )
    o_ref[...] = out.astype(o_ref.dtype)


def prepare_generator_params(params, cond_dim):
    """One-time parameter prep (offline, not per forward call): split W1 for the fused
    concat and zero-pad hidden/output dims to lane-dense multiples of 128.  Zero padding
    is mathematically inert (extra hidden units see zero weights in/out; extra output
    columns are sliced off by the wrapper).

    Returns (prepared_arrays_dict, n_outputs).  `n_outputs` is kept OUT of the dict so
    it can be passed to the jitted forward as a static argument."""
    w1, b1, w2, b2 = params["w1"], params["b1"], params["w2"], params["b2"]
    n_inputs, hidden = w1.shape
    n_outputs = w2.shape[1]

    h_pad = _round_up(hidden, 128)
    n_pad = _round_up(n_outputs, 128)

    prepared = {
        "w1c": jnp.pad(w1[:cond_dim], ((0, 0), (0, h_pad - hidden))),
        "w1n": jnp.pad(w1[cond_dim:], ((0, 0), (0, h_pad - hidden))),
        "b1": jnp.pad(b1, ((0, 0), (0, h_pad - hidden))),
        "w2": jnp.pad(w2, ((0, h_pad - hidden), (0, n_pad - n_outputs))),
        "b2": jnp.pad(b2, ((0, 0), (0, n_pad - n_outputs))),
    }
    return prepared, int(n_outputs)


@functools.partial(jax.jit, static_argnames=("n_outputs", "tm"))
def generator_forward(x_cond, x_noise, prepared, *, n_outputs, tm=512):
    """Forward pass. `prepared` comes from prepare_generator_params (arrays only)."""
    w1c, w1n = prepared["w1c"], prepared["w1n"]
    b1, w2, b2 = prepared["b1"], prepared["w2"], prepared["b2"]

    B, cond_dim = x_cond.shape
    noise_dim = x_noise.shape[1]
    h_pad = w1c.shape[1]
    n_pad = w2.shape[1]

    # Batch tile: multiple of 8 sublanes, capped at `tm` rows.  Working set per step
    # (double-buffered x tiles + lane-dense output tile + resident weights) stays far
    # below even v7x's 64 MiB VMEM for tm<=1024 at these feature widths.
    tm_eff = min(tm, _round_up(B, 8))
    b_pad = _round_up(B, tm_eff)
    if b_pad != B:
        x_cond = jnp.pad(x_cond, ((0, b_pad - B), (0, 0)))
        x_noise = jnp.pad(x_noise, ((0, b_pad - B), (0, 0)))

    grid = (b_pad // tm_eff,)

    out_padded = pl.pallas_call(
        generator_kernel,
        out_shape=jax.ShapeDtypeStruct((b_pad, n_pad), x_cond.dtype),
        grid=grid,
        in_specs=[
            pl.BlockSpec((tm_eff, cond_dim), lambda i: (i, 0)),     # x_cond tile
            pl.BlockSpec((tm_eff, noise_dim), lambda i: (i, 0)),    # x_noise tile
            pl.BlockSpec((cond_dim, h_pad), lambda i: (0, 0)),      # W1_cond (resident)
            pl.BlockSpec((noise_dim, h_pad), lambda i: (0, 0)),     # W1_noise (resident)
            pl.BlockSpec((1, h_pad), lambda i: (0, 0)),             # b1 (resident)
            pl.BlockSpec((h_pad, n_pad), lambda i: (0, 0)),         # W2 (resident)
            pl.BlockSpec((1, n_pad), lambda i: (0, 0)),             # b2 (resident)
        ],
        out_specs=pl.BlockSpec((tm_eff, n_pad), lambda i: (i, 0)),  # lane-dense output
        compiler_params=pltpu.CompilerParams(
            dimension_semantics=("parallel",),   # shard batch tiles across TCs on v7x
        ),
    )(x_cond, x_noise, w1c, w1n, b1, w2, b2)

    # Static slices (B, n_outputs are Python ints here): layout glue, fused by XLA.
    return out_padded[:B, :n_outputs]


def init_generator_params(key, n_inputs, n_outputs, hidden_size=64, dtype=jnp.float32):
    """Deterministic synthetic init mirroring nn.Linear parameter shapes.
    (torch stores weight as [out, in]; we store the transpose [in, out] so the kernel
    computes x @ W)."""
    k1, k2, k3, k4 = jax.random.split(key, 4)
    bound1 = 1.0 / jnp.sqrt(n_inputs)
    bound2 = 1.0 / jnp.sqrt(hidden_size)
    return {
        "w1": jax.random.uniform(k1, (n_inputs, hidden_size), dtype, -bound1, bound1),
        "b1": jax.random.uniform(k2, (1, hidden_size), dtype, -bound1, bound1),
        "w2": jax.random.uniform(k3, (hidden_size, n_outputs), dtype, -bound2, bound2),
        "b2": jax.random.uniform(k4, (1, n_outputs), dtype, -bound2, bound2),
    }


def generator_reference(x_cond, x_noise, params):
    x = jnp.concatenate([x_cond, x_noise], axis=1)
    h = jnp.tanh(x @ params["w1"] + params["b1"])
    return h @ params["w2"] + params["b2"]


if __name__ == "__main__":
    key = jax.random.PRNGKey(0)
    k_cond, k_noise, k_params, k_cond2, k_noise2 = jax.random.split(key, 5)

    batch = 8
    cond_dim = 4
    noise_dim = 4
    n_inputs = cond_dim + noise_dim   # Generator's n_inputs is the concatenated width
    n_outputs = 4
    hidden_size = 32

    params = init_generator_params(k_params, n_inputs, n_outputs, hidden_size)
    prepared, n_out = prepare_generator_params(params, cond_dim)

    # --- small-batch check (single grid step) ---
    x_cond = jax.random.normal(k_cond, (batch, cond_dim), jnp.float32)
    x_noise = jax.random.normal(k_noise, (batch, noise_dim), jnp.float32)
    out = jax.block_until_ready(
        generator_forward(x_cond, x_noise, prepared, n_outputs=n_out)
    )
    ref = generator_reference(x_cond, x_noise, params)
    assert out.shape == (batch, n_outputs), out.shape
    assert jnp.allclose(out, ref, atol=1e-5, rtol=1e-5), "mismatch vs pure-JAX reference (small batch)"

    # --- larger ragged batch check (exercises batch tiling + padding, grid > 1) ---
    batch2 = 300
    x_cond2 = jax.random.normal(k_cond2, (batch2, cond_dim), jnp.float32)
    x_noise2 = jax.random.normal(k_noise2, (batch2, noise_dim), jnp.float32)
    out2 = jax.block_until_ready(
        generator_forward(x_cond2, x_noise2, prepared, n_outputs=n_out, tm=128)
    )
    ref2 = generator_reference(x_cond2, x_noise2, params)
    assert out2.shape == (batch2, n_outputs), out2.shape
    assert jnp.allclose(out2, ref2, atol=1e-5, rtol=1e-5), "mismatch vs pure-JAX reference (tiled batch)"

    print("KERNEL_OK")
</pallas_src>

<mosaic_0001>
module attributes {stable_mosaic.version = 11 : i64} {
  func.func @generator_kernel(%arg0: i32, %arg1: memref<8x4xf32, #tpu.memory_space<vmem>>, %arg2: memref<8x4xf32, #tpu.memory_space<vmem>>, %arg3: memref<4x128xf32, #tpu.memory_space<vmem>>, %arg4: memref<4x128xf32, #tpu.memory_space<vmem>>, %arg5: memref<1x128xf32, #tpu.memory_space<vmem>>, %arg6: memref<128x128xf32, #tpu.memory_space<vmem>>, %arg7: memref<1x128xf32, #tpu.memory_space<vmem>>, %arg8: memref<8x128xf32, #tpu.memory_space<vmem>>) attributes {dimension_semantics = [#tpu.dimension_semantics<parallel>], iteration_bounds = array<i64: 1>, scalar_prefetch = 0 : i64, scratch_operands = 0 : i64, tpu.core_type = #tpu.core_type<tc>, window_params = [{transform_indices = @transform_0, window_bounds = array<i64: 8, 4>}, {transform_indices = @transform_1, window_bounds = array<i64: 8, 4>}, {pipeline_mode = #tpu.pipeline_mode<synchronous>, transform_indices = @transform_2, window_bounds = array<i64: 4, 128>}, {pipeline_mode = #tpu.pipeline_mode<synchronous>, transform_indices = @transform_3, window_bounds = array<i64: 4, 128>}, {pipeline_mode = #tpu.pipeline_mode<synchronous>, transform_indices = @transform_4, window_bounds = array<i64: 1, 128>}, {pipeline_mode = #tpu.pipeline_mode<synchronous>, transform_indices = @transform_5, window_bounds = array<i64: 128, 128>}, {pipeline_mode = #tpu.pipeline_mode<synchronous>, transform_indices = @transform_6, window_bounds = array<i64: 1, 128>}, {transform_indices = @transform_7, window_bounds = array<i64: 8, 128>}]} {
    %c0 = arith.constant 0 : index
    %c0_0 = arith.constant 0 : index
    %0 = vector.load %arg1[%c0, %c0_0] : memref<8x4xf32, #tpu.memory_space<vmem>>, vector<8x4xf32>
    %c0_1 = arith.constant 0 : index
    %c0_2 = arith.constant 0 : index
    %1 = vector.load %arg3[%c0_1, %c0_2] : memref<4x128xf32, #tpu.memory_space<vmem>>, vector<4x128xf32>
    %cst = arith.constant dense<0.000000e+00> : vector<8x128xf32>
    %2 = tpu.matmul %0, %1, %cst {dimension_numbers = #tpu.dot_dimension_numbers<[1], [0], [0], [1], [0, 0, 1, 1], [], []>} : vector<8x4xf32>, vector<4x128xf32>, vector<8x128xf32> -> vector<8x128xf32>
    %c0_3 = arith.constant 0 : index
    %c0_4 = arith.constant 0 : index
    %3 = vector.load %arg2[%c0_3, %c0_4] : memref<8x4xf32, #tpu.memory_space<vmem>>, vector<8x4xf32>
    %c0_5 = arith.constant 0 : index
    %c0_6 = arith.constant 0 : index
    %4 = vector.load %arg4[%c0_5, %c0_6] : memref<4x128xf32, #tpu.memory_space<vmem>>, vector<4x128xf32>
    %cst_7 = arith.constant dense<0.000000e+00> : vector<8x128xf32>
    %5 = tpu.matmul %3, %4, %cst_7 {dimension_numbers = #tpu.dot_dimension_numbers<[1], [0], [0], [1], [0, 0, 1, 1], [], []>} : vector<8x4xf32>, vector<4x128xf32>, vector<8x128xf32> -> vector<8x128xf32>
    %6 = arith.addf %2, %5 : vector<8x128xf32>
    %c0_8 = arith.constant 0 : index
    %c0_9 = arith.constant 0 : index
    %7 = vector.load %arg5[%c0_8, %c0_9] : memref<1x128xf32, #tpu.memory_space<vmem>>, vector<1x128xf32>
    %8 = vector.broadcast %7 : vector<1x128xf32> to vector<8x128xf32>
    %9 = arith.addf %6, %8 : vector<8x128xf32>
    %10 = math.tanh %9 : vector<8x128xf32>
    %c0_10 = arith.constant 0 : index
    %c0_11 = arith.constant 0 : index
    %11 = vector.load %arg6[%c0_10, %c0_11] : memref<128x128xf32, #tpu.memory_space<vmem>>, vector<128x128xf32>
    %cst_12 = arith.constant dense<0.000000e+00> : vector<8x128xf32>
    %12 = tpu.matmul %10, %11, %cst_12 {dimension_numbers = #tpu.dot_dimension_numbers<[1], [0], [0], [1], [0, 0, 1, 1], [], []>} : vector<8x128xf32>, vector<128x128xf32>, vector<8x128xf32> -> vector<8x128xf32>
    %c0_13 = arith.constant 0 : index
    %c0_14 = arith.constant 0 : index
    %13 = vector.load %arg7[%c0_13, %c0_14] : memref<1x128xf32, #tpu.memory_space<vmem>>, vector<1x128xf32>
    %14 = vector.broadcast %13 : vector<1x128xf32> to vector<8x128xf32>
    %15 = arith.addf %12, %14 : vector<8x128xf32>
    %c0_15 = arith.constant 0 : index
    %c0_16 = arith.constant 0 : index
    %16 = vector.load %arg8[%c0_15, %c0_16] : memref<8x128xf32, #tpu.memory_space<vmem>>, vector<8x128xf32>
    tpu.vector_store %arg8[%c0_15, %c0_16], %15 {strides = array<i32>} : memref<8x128xf32, #tpu.memory_space<vmem>>, vector<8x128xf32>,
    return
  }
  func.func @transform_0(%arg0: i32) -> (i32, i32) {
    %c0_i32 = arith.constant 0 : i32
    %c0_i32_0 = arith.constant 0 : i32
    return %arg0, %c0_i32 : i32, i32
  }
  func.func @transform_1(%arg0: i32) -> (i32, i32) {
    %c0_i32 = arith.constant 0 : i32
    %c0_i32_0 = arith.constant 0 : i32
    return %arg0, %c0_i32 : i32, i32
  }
  func.func @transform_2(%arg0: i32) -> (i32, i32) {
    %c0_i32 = arith.constant 0 : i32
    %c0_i32_0 = arith.constant 0 : i32
    %c0_i32_1 = arith.constant 0 : i32
    return %c0_i32, %c0_i32_0 : i32, i32
  }
  func.func @transform_3(%arg0: i32) -> (i32, i32) {
    %c0_i32 = arith.constant 0 : i32
    %c0_i32_0 = arith.constant 0 : i32
    %c0_i32_1 = arith.constant 0 : i32
    return %c0_i32, %c0_i32_0 : i32, i32
  }
  func.func @transform_4(%arg0: i32) -> (i32, i32) {
    %c0_i32 = arith.constant 0 : i32
    %c0_i32_0 = arith.constant 0 : i32
    %c0_i32_1 = arith.constant 0 : i32
    return %c0_i32, %c0_i32_0 : i32, i32
  }
  func.func @transform_5(%arg0: i32) -> (i32, i32) {
    %c0_i32 = arith.constant 0 : i32
    %c0_i32_0 = arith.constant 0 : i32
    %c0_i32_1 = arith.constant 0 : i32
    return %c0_i32, %c0_i32_0 : i32, i32
  }
  func.func @transform_6(%arg0: i32) -> (i32, i32) {
    %c0_i32 = arith.constant 0 : i32
    %c0_i32_0 = arith.constant 0 : i32
    %c0_i32_1 = arith.constant 0 : i32
    return %c0_i32, %c0_i32_0 : i32, i32
  }
  func.func @transform_7(%arg0: i32) -> (i32, i32) {
    %c0_i32 = arith.constant 0 : i32
    %c0_i32_0 = arith.constant 0 : i32
    return %arg0, %c0_i32 : i32, i32
  }
}

</mosaic_0001>

<llo_original>
// kernel: generator_forward.1
$region0: #{generator_forward.1}
  #allocation0 [shape = 'u32[]', space=smem, size = 0x4, offset = 0x4, fixed_abs, tag = 'smem constant byte address 0x4 - core index']
  #allocation1 [shape = 'u32[144,128]{1,0:T(1,128)}', space=vmem, size = 0x12000, scoped, tag = 'internal scratch']
  %s0 = inlined_call_operand.vmem [shape: f32[8,4], index: 0, kind: input, shape index: {}]
  %s1 = inlined_call_operand.vmem [shape: f32[8,4], index: 1, kind: input, shape index: {}]
  %s2 = inlined_call_operand.vmem [shape: f32[4,128], index: 2, kind: input, shape index: {}]
  %s3 = inlined_call_operand.vmem [shape: f32[4,128], index: 3, kind: input, shape index: {}]
  %s4 = inlined_call_operand.vmem [shape: f32[1,128], index: 4, kind: input, shape index: {}]
  %s5 = inlined_call_operand.hbm [shape: f32[128,128], index: 5, kind: input, shape index: {}]
  %s6 = inlined_call_operand.vmem [shape: f32[1,128], index: 6, kind: input, shape index: {}]
  %s7 = inlined_call_operand.vmem [shape: f32[8,128], index: 7, kind: output, shape index: {}]
  %s8 = sld [smem:[#allocation0]]
  $region42: #{generator_forward.1} parent=0
    _
  %s10 = ssub.s32 1, %s8
  %s11 = scalar_select 0, %s10, %s8
  $region1: #{generator_forward.1} parent=0
    #allocation2 [shape = 'u8[65536]{0}', space=vmem, size = 0x10000, scoped, tag = 'input window, operand 5, single buffered']
    #allocation3 [shape = 's32[1]{0}', space=sflag, size = 0x4, scoped, tag = 'scoped memory for generator_forward.1']
    %12 = vsyncpa [#allocation3], 0
    // Predicated region
    $region2: #{generator_forward.1} parent=1 // pred_check
      _
    $region3: #{generator_forward.1} parent=1 // pred_check_branch
      %14 = sbr.rel (0) target = $region5
    $region4: #{generator_forward.1} parent=1 // pred_region
      _
    $region5: #{generator_forward.1} parent=1 // pred_fallthru
      _
    // Predicated region
    $region6: #{generator_forward.1} parent=1 // pred_check
      _
    $region7: #{generator_forward.1} parent=1 // pred_check_branch
      %16 = sbr.rel (0) target = $region9
    $region8: #{generator_forward.1} parent=1 // pred_region
      _
    $region9: #{generator_forward.1} parent=1 // pred_fallthru
      _
    // Predicated region
    $region10: #{generator_forward.1} parent=1 // pred_check
      _
    $region11: #{generator_forward.1} parent=1 // pred_check_branch
      %18 = sbr.rel (0) target = $region13
    $region12: #{generator_forward.1} parent=1 // pred_region
      _
    $region13: #{generator_forward.1} parent=1 // pred_fallthru
      _
    // Predicated region
    $region14: #{generator_forward.1} parent=1 // pred_check
      _
    $region15: #{generator_forward.1} parent=1 // pred_check_branch
      %20 = sbr.rel (0) target = $region17
    $region16: #{generator_forward.1} parent=1 // pred_region
      _
    $region17: #{generator_forward.1} parent=1 // pred_fallthru
      _
    // Predicated region
    $region18: #{generator_forward.1} parent=1 // pred_check
      _
    $region19: #{generator_forward.1} parent=1 // pred_check_branch
      %22 = sbr.rel (0) target = $region21
    $region20: #{generator_forward.1} parent=1 // pred_region
      _
    $region21: #{generator_forward.1} parent=1 // pred_fallthru
      _
    // Predicated region
    $region22: #{generator_forward.1} parent=1 // pred_check
      _
    $region23: #{generator_forward.1} parent=1 // pred_check_branch
      %24 = sbr.rel (0) target = $region25
    $region24: #{generator_forward.1} parent=1 // pred_region
      %s26 = ssub.s32 2048, 2048
      %27 = vsyncadd [#allocation3], %s26
      %s28 = sshll.u32 [#allocation2], 4
      %s29 = int_to_ptr.vmem [resolvable:$true] %s28
      %34 = dma.hbm_to_vmem [thread:$0]  %s5, 2048, %s29, [#allocation3], 128, 128, 8
    $region25: #{generator_forward.1} parent=1 // pred_fallthru
      _
    // Predicated region
    $region26: #{generator_forward.1} parent=1 // pred_check
      _
    $region27: #{generator_forward.1} parent=1 // pred_check_branch
      %36 = sbr.rel (0) target = $region29
    $region28: #{generator_forward.1} parent=1 // pred_region
      _
    $region29: #{generator_forward.1} parent=1 // pred_fallthru
      _
    // Predicated region
    $region30: #{generator_forward.1} parent=1 // pred_check
      _
    $region31: #{generator_forward.1} parent=1 // pred_check_branch
      %38 = sbr.rel (0) target = $region33
    $region32: #{generator_forward.1} parent=1 // pred_region
      %39 = dma.done [#allocation3], 2048
    $region33: #{generator_forward.1} parent=1 // pred_fallthru
      _
    %v40 = vld [vmem:[%s0] sm:$0xff]
    %v41 = vld [vmem:[%s2] sm:$0xf]
    %v42 = vld [vmem:[%s1] sm:$0xff]
    %v43 = vld [vmem:[%s3] sm:$0xf]
    %vm44 = vcmask 31744
    %v46 = vsel %vm44, %v42, 0
    %vm48 = vcmask 1043456
    %v50 = vsel %vm48, %v43, 0
    %52 = vmatprep.subr.mxu0 0.0
    %53 = vmatpush1.msra.mxu0 %v50
    %54 = vmatprep.subr.mxu0 0.0
    %55 = vmatpush1.msra.mxu0 0.0
    %56 = vmatprep.subr.mxu0 0.0
    %57 = vmatpush1.msra.mxu0 0.0
    %58 = vmatprep.subr.mxu0 0.0
    %59 = vmatpush1.msra.mxu0 0.0
    %60 = vmatprep.subr.mxu0 0.0
    %61 = vmatpush1.msra.mxu0 0.0
    %62 = vmatprep.subr.mxu0 0.0
    %63 = vmatpush1.msra.mxu0 0.0
    %64 = vmatprep.subr.mxu0 0.0
    %65 = vmatpush1.msra.mxu0 0.0
    %66 = vmatprep.subr.mxu0 0.0
    %67 = vmatpush1.msra.mxu0 0.0
    %68 = vmatprep.subr.mxu0 0.0
    %69 = vmatpush1.msra.mxu0 0.0
    %70 = vmatprep.subr.mxu0 0.0
    %71 = vmatpush1.msra.mxu0 0.0
    %72 = vmatprep.subr.mxu0 0.0
    %73 = vmatpush1.msra.mxu0 0.0
    %74 = vmatprep.subr.mxu0 0.0
    %75 = vmatpush1.msra.mxu0 0.0
    %76 = vmatprep.subr.mxu0 0.0
    %77 = vmatpush1.msra.mxu0 0.0
    %78 = vmatprep.subr.mxu0 0.0
    %79 = vmatpush1.msra.mxu0 0.0
    %80 = vmatprep.subr.mxu0 0.0
    %81 = vmatpush1.msra.mxu0 0.0
    %82 = vmatprep.subr.mxu0 0.0
    %83 = vmatpush1.msra.mxu0 0.0
    %84 = vmatprep.subr.mxu0 0.0
    %85 = vmatpush1.msra.mxu0 0.0
    %86 = vmatprep.subr.mxu0 0.0
    %87 = vmatpush1.msra.mxu0 0.0
    %88 = vmatprep.subr.mxu0 0.0
    %89 = vmatpush1.msra.mxu0 0.0
    %90 = vmatprep.subr.mxu0 0.0
    %91 = vmatpush1.msra.mxu0 0.0
    %92 = vmatprep.subr.mxu0 0.0
    %93 = vmatpush1.msra.mxu0 0.0
    %94 = vmatprep.subr.mxu0 0.0
    %95 = vmatpush1.msra.mxu0 0.0
    %96 = vmatprep.subr.mxu0 0.0
    %97 = vmatpush1.msra.mxu0 0.0
    %98 = vmatprep.subr.mxu0 0.0
    %99 = vmatpush1.msra.mxu0 0.0
    %100 = vmatprep.subr.mxu0 0.0
    %101 = vmatpush1.msra.mxu0 0.0
    %102 = vmatprep.subr.mxu0 0.0
    %103 = vmatpush1.msra.mxu0 0.0
    %104 = vmatprep.subr.mxu0 0.0
    %105 = vmatpush1.msra.mxu0 0.0
    %106 = vmatprep.subr.mxu0 0.0
    %107 = vmatpush1.msra.mxu0 0.0
    %108 = vmatprep.subr.mxu0 0.0
    %109 = vmatpush1.msra.mxu0 0.0
    %110 = vmatprep.subr.mxu0 0.0
    %111 = vmatpush1.msra.mxu0 0.0
    %112 = vmatprep.subr.mxu0 0.0
    %113 = vmatpush1.msra.mxu0 0.0
    %114 = vmatprep.subr.mxu0 0.0
    %115 = vmatpush1.msra.mxu0 0.0
    %116 = vmatprep.mubr.f32.mxu0 0.0
    %117 = vmatmul.mubr.f32.gmra.mrb[0].mxu0 %v46
    %v118 = vpop.f32.mrb[0].mxu0
    %v119 = vadd.f32 0.0, %v118
    %v120 = vpop.f32.mrb[0].mxu0
    %121 = vdwg.mxu0
    %v123 = vsel %vm44, %v40, 0
    %v126 = vsel %vm48, %v41, 0
    %128 = vmatprep.subr.mxu0 0.0
    %129 = vmatpush1.msra.mxu0 %v126
    %130 = vmatprep.subr.mxu0 0.0
    %131 = vmatpush1.msra.mxu0 0.0
    %132 = vmatprep.subr.mxu0 0.0
    %133 = vmatpush1.msra.mxu0 0.0
    %134 = vmatprep.subr.mxu0 0.0
    %135 = vmatpush1.msra.mxu0 0.0
    %136 = vmatprep.subr.mxu0 0.0
    %137 = vmatpush1.msra.mxu0 0.0
    %138 = vmatprep.subr.mxu0 0.0
    %139 = vmatpush1.msra.mxu0 0.0
    %140 = vmatprep.subr.mxu0 0.0
    %141 = vmatpush1.msra.mxu0 0.0
    %142 = vmatprep.subr.mxu0 0.0
    %143 = vmatpush1.msra.mxu0 0.0
    %144 = vmatprep.subr.mxu0 0.0
    %145 = vmatpush1.msra.mxu0 0.0
    %146 = vmatprep.subr.mxu0 0.0
    %147 = vmatpush1.msra.mxu0 0.0
    %148 = vmatprep.subr.mxu0 0.0
    %149 = vmatpush1.msra.mxu0 0.0
    %150 = vmatprep.subr.mxu0 0.0
    %151 = vmatpush1.msra.mxu0 0.0
    %152 = vmatprep.subr.mxu0 0.0
    %153 = vmatpush1.msra.mxu0 0.0
    %154 = vmatprep.subr.mxu0 0.0
    %155 = vmatpush1.msra.mxu0 0.0
    %156 = vmatprep.subr.mxu0 0.0
    %157 = vmatpush1.msra.mxu0 0.0
    %158 = vmatprep.subr.mxu0 0.0
    %159 = vmatpush1.msra.mxu0 0.0
    %160 = vmatprep.subr.mxu0 0.0
    %161 = vmatpush1.msra.mxu0 0.0
    %162 = vmatprep.subr.mxu0 0.0
    %163 = vmatpush1.msra.mxu0 0.0
    %164 = vmatprep.subr.mxu0 0.0
    %165 = vmatpush1.msra.mxu0 0.0
    %166 = vmatprep.subr.mxu0 0.0
    %167 = vmatpush1.msra.mxu0 0.0
    %168 = vmatprep.subr.mxu0 0.0
    %169 = vmatpush1.msra.mxu0 0.0
    %170 = vmatprep.subr.mxu0 0.0
    %171 = vmatpush1.msra.mxu0 0.0
    %172 = vmatprep.subr.mxu0 0.0
    %173 = vmatpush1.msra.mxu0 0.0
    %174 = vmatprep.subr.mxu0 0.0
    %175 = vmatpush1.msra.mxu0 0.0
    %176 = vmatprep.subr.mxu0 0.0
    %177 = vmatpush1.msra.mxu0 0.0
    %178 = vmatprep.subr.mxu0 0.0
    %179 = vmatpush1.msra.mxu0 0.0
    %180 = vmatprep.subr.mxu0 0.0
    %181 = vmatpush1.msra.mxu0 0.0
    %182 = vmatprep.subr.mxu0 0.0
    %183 = vmatpush1.msra.mxu0 0.0
    %184 = vmatprep.subr.mxu0 0.0
    %185 = vmatpush1.msra.mxu0 0.0
    %186 = vmatprep.subr.mxu0 0.0
    %187 = vmatpush1.msra.mxu0 0.0
    %188 = vmatprep.subr.mxu0 0.0
    %189 = vmatpush1.msra.mxu0 0.0
    %190 = vmatprep.subr.mxu0 0.0
    %191 = vmatpush1.msra.mxu0 0.0
    %192 = vmatprep.mubr.f32.mxu0 0.0
    %193 = vmatmul.mubr.f32.gmra.mrb[0].mxu0 %v123
    %v194 = vpop.f32.mrb[0].mxu0
    %v195 = vadd.f32 %v119, %v194
    %v196 = vpop.f32.mrb[0].mxu0
    %197 = vdwg.mxu0
    %v198 = vld [vmem:[%s4] sm:$0x1]
    %v200 = vlaneseq
    %v201 = vshrl.u32 %v200, 7
    %v202 = vsub.s32 0, %v201
    %v203 = vrot.slane %v198, %v202
    %v205 = vadd.f32 %v195, %v203
    %v206 = vtanh.pop %v205
    %v207 = vld [vmem:[#allocation2] sm:$0xff]
    %v208 = vld [vmem:[#allocation2 + $0x8] sm:$0xff]
    %v209 = vld [vmem:[#allocation2 + $0x10] sm:$0xff]
    %v210 = vld [vmem:[#allocation2 + $0x18] sm:$0xff]
    %v211 = vld [vmem:[#allocation2 + $0x20] sm:$0xff]
    %v212 = vld [vmem:[#allocation2 + $0x28] sm:$0xff]
    %v213 = vld [vmem:[#allocation2 + $0x30] sm:$0xff]
    %v214 = vld [vmem:[#allocation2 + $0x38] sm:$0xff]
    %v215 = vld [vmem:[#allocation2 + $0x40] sm:$0xff]
    %v216 = vld [vmem:[#allocation2 + $0x48] sm:$0xff]
    %v217 = vld [vmem:[#allocation2 + $0x50] sm:$0xff]
    %v218 = vld [vmem:[#allocation2 + $0x58] sm:$0xff]
    %v219 = vld [vmem:[#allocation2 + $0x60] sm:$0xff]
    %v220 = vld [vmem:[#allocation2 + $0x68] sm:$0xff]
    %v221 = vld [vmem:[#allocation2 + $0x70] sm:$0xff]
    %v222 = vld [vmem:[#allocation2 + $0x78] sm:$0xff]
    %v223 = vld [vmem:[%s6] sm:$0x1]
    %v225 = vlaneseq
    %v226 = vshrl.u32 %v225, 7
    %v227 = vsub.s32 0, %v226
    %v228 = vrot.slane %v223, %v227
    %230 = vmatprep.subr.mxu0 0.0
    %231 = vmatpush1.msra.mxu0 %v207
    %232 = vmatprep.subr.mxu0 0.0
    %233 = vmatpush1.msra.mxu0 %v208
    %234 = vmatprep.subr.mxu0 0.0
    %235 = vmatpush1.msra.mxu0 %v209
    %236 = vmatprep.subr.mxu0 0.0
    %237 = vmatpush1.msra.mxu0 %v210
    %238 = vmatprep.subr.mxu0 0.0
    %239 = vmatpush1.msra.mxu0 %v211
    %240 = vmatprep.subr.mxu0 0.0
    %241 = vmatpush1.msra.mxu0 %v212
    %242 = vmatprep.subr.mxu0 0.0
    %243 = vmatpush1.msra.mxu0 %v213
    %244 = vmatprep.subr.mxu0 0.0
    %245 = vmatpush1.msra.mxu0 %v214
    %246 = vmatprep.subr.mxu0 0.0
    %247 = vmatpush1.msra.mxu0 %v215
    %248 = vmatprep.subr.mxu0 0.0
    %249 = vmatpush1.msra.mxu0 %v216
    %250 = vmatprep.subr.mxu0 0.0
    %251 = vmatpush1.msra.mxu0 %v217
    %252 = vmatprep.subr.mxu0 0.0
    %253 = vmatpush1.msra.mxu0 %v218
    %254 = vmatprep.subr.mxu0 0.0
    %255 = vmatpush1.msra.mxu0 %v219
    %256 = vmatprep.subr.mxu0 0.0
    %257 = vmatpush1.msra.mxu0 %v220
    %258 = vmatprep.subr.mxu0 0.0
    %259 = vmatpush1.msra.mxu0 %v221
    %260 = vmatprep.subr.mxu0 0.0
    %261 = vmatpush1.msra.mxu0 %v222
    %262 = vmatprep.subr.mxu0 0.0
    %263 = vmatpush1.msra.mxu0 0.0
    %264 = vmatprep.subr.mxu0 0.0
    %265 = vmatpush1.msra.mxu0 0.0
    %266 = vmatprep.subr.mxu0 0.0
    %267 = vmatpush1.msra.mxu0 0.0
    %268 = vmatprep.subr.mxu0 0.0
    %269 = vmatpush1.msra.mxu0 0.0
    %270 = vmatprep.subr.mxu0 0.0
    %271 = vmatpush1.msra.mxu0 0.0
    %272 = vmatprep.subr.mxu0 0.0
    %273 = vmatpush1.msra.mxu0 0.0
    %274 = vmatprep.subr.mxu0 0.0
    %275 = vmatpush1.msra.mxu0 0.0
    %276 = vmatprep.subr.mxu0 0.0
    %277 = vmatpush1.msra.mxu0 0.0
    %278 = vmatprep.subr.mxu0 0.0
    %279 = vmatpush1.msra.mxu0 0.0
    %280 = vmatprep.subr.mxu0 0.0
    %281 = vmatpush1.msra.mxu0 0.0
    %282 = vmatprep.subr.mxu0 0.0
    %283 = vmatpush1.msra.mxu0 0.0
    %284 = vmatprep.subr.mxu0 0.0
    %285 = vmatpush1.msra.mxu0 0.0
    %286 = vmatprep.subr.mxu0 0.0
    %287 = vmatpush1.msra.mxu0 0.0
    %288 = vmatprep.subr.mxu0 0.0
    %289 = vmatpush1.msra.mxu0 0.0
    %290 = vmatprep.subr.mxu0 0.0
    %291 = vmatpush1.msra.mxu0 0.0
    %292 = vmatprep.subr.mxu0 0.0
    %293 = vmatpush1.msra.mxu0 0.0
    %294 = vmatprep.mubr.f32.mxu0 0.0
    %295 = vmatmul.mubr.f32.gmra.mrb[0].mxu0 %v206
    %v296 = vpop.f32.mrb[0].mxu0
    %v297 = vadd.f32 %v228, %v296
    %v298 = vpop.f32.mrb[0].mxu0
    %299 = vdwg.mxu0
    %300 = vst [vmem:[%s7] sm:$0xff] %v297
    // Predicated region
    $region34: #{generator_forward.1} parent=1 // pred_check
      _
    $region35: #{generator_forward.1} parent=1 // pred_check_branch
      %302 = sbr.rel (0) target = $region37
    $region36: #{generator_forward.1} parent=1 // pred_region
      _
    $region37: #{generator_forward.1} parent=1 // pred_fallthru
      _
    // Predicated region
    $region38: #{generator_forward.1} parent=1 // pred_check
      _
    $region39: #{generator_forward.1} parent=1 // pred_check_branch
      %304 = sbr.rel (0) target = $region41
    $region40: #{generator_forward.1} parent=1 // pred_region
      _
    $region41: #{generator_forward.1} parent=1 // pred_fallthru
      _
    %305 = vsyncpa [#allocation3], 1

</llo_original>
